<compile_context>
chip_gen: v5e
topology: v5e:2x2
jax: 0.10.0
libtpu: 0.0.40
codegen_flags: <defaults>
</compile_context>

<pallas_src>
import jax
import jax.numpy as jnp
import numpy as np
from jax.experimental import pallas as pl
from jax.experimental.pallas import tpu as pltpu


# ~8 MiB per DMA chunk, two chunks in flight.  Purely a DMA-queueing choice:
# no VMEM is consumed, so this is safe on v7x's 64 MiB VMEM as well as
# v5e/v6e's 128 MiB.
_CHUNK_TARGET_BYTES = 8 * 1024 * 1024


def _choose_slab(shape) -> tuple[int, int]:
    """Flatten `shape` to a lane-dense (rows, cols) slab.

    cols is the largest of {1024, 512, 256, 128} dividing the element count
    (identity copies do not care about logical layout); otherwise fall back to
    the natural (batch*seq, hidden) flattening.
    """
    total = 1
    for d in shape:
        total *= int(d)
    for c in (1024, 512, 256, 128):
        if total % c == 0:
            return total // c, c
    return total // int(shape[-1]), int(shape[-1])


def _make_hbm_copy_kernel(chunk_rows: int, n_chunks: int, rem_rows: int):
    """HBM->HBM identity copy: chunked async DMAs, <=2 in flight, zero VMEM."""

    def kernel(x_hbm, o_hbm, sem):
        def chunk_copy(i, slot):
            return pltpu.make_async_copy(
                x_hbm.at[pl.ds(i * chunk_rows, chunk_rows)],
                o_hbm.at[pl.ds(i * chunk_rows, chunk_rows)],
                sem.at[slot],
            )

        # Prime up to two in-flight chunk DMAs.
        if n_chunks >= 1:
            chunk_copy(0, 0).start()
        if n_chunks >= 2:
            chunk_copy(1, 1).start()

        # Steady state: wait for the chunk issued two steps ago, then reuse
        # its semaphore slot, keeping exactly two DMAs in flight.
        if n_chunks >= 3:
            @pl.loop(2, n_chunks)
            def _(i):
                slot = i % 2
                chunk_copy(i - 2, slot).wait()
                chunk_copy(i, slot).start()

        # Static-size remainder overlaps the drain of the last full chunks.
        if rem_rows > 0:
            rem_start = n_chunks * chunk_rows
            rem_cp = pltpu.make_async_copy(
                x_hbm.at[pl.ds(rem_start, rem_rows)],
                o_hbm.at[pl.ds(rem_start, rem_rows)],
                sem.at[2],
            )
            rem_cp.start()

        # Drain.
        if n_chunks >= 2:
            chunk_copy(n_chunks - 2, (n_chunks - 2) % 2).wait()
        if n_chunks >= 1:
            chunk_copy(n_chunks - 1, (n_chunks - 1) % 2).wait()
        if rem_rows > 0:
            rem_cp.wait()

    return kernel


def _nosort_hbm_copy(x2: jnp.ndarray, chunk_bytes: int) -> jnp.ndarray:
    rows, cols = x2.shape
    itemsize = np.dtype(x2.dtype).itemsize
    row_bytes = cols * itemsize
    chunk_rows = max(1, min(rows, chunk_bytes // max(1, row_bytes)))
    n_chunks = rows // chunk_rows
    rem_rows = rows - n_chunks * chunk_rows

    return pl.pallas_call(
        _make_hbm_copy_kernel(chunk_rows, n_chunks, rem_rows),
        out_shape=jax.ShapeDtypeStruct((rows, cols), x2.dtype),
        in_specs=[pl.BlockSpec(memory_space=pl.ANY)],
        out_specs=pl.BlockSpec(memory_space=pl.ANY),
        scratch_shapes=[pltpu.SemaphoreType.DMA((3,))],
        cost_estimate=pl.CostEstimate(
            flops=0,
            transcendentals=0,
            bytes_accessed=2 * rows * cols * itemsize,
        ),
    )(x2)


def _noop_aliased_kernel(x_hbm, o_hbm, sem):
    # The output aliases the input buffer, which already contains every byte
    # of the result, so no data needs to move.  We DMA a single row of the
    # buffer onto itself purely as a cheap, well-supported read+write
    # dependency (pltpu.touch(o_hbm) would express the same intent with zero
    # bytes moved).
    cp = pltpu.make_async_copy(x_hbm.at[pl.ds(0, 1)], o_hbm.at[pl.ds(0, 1)], sem)
    cp.start()
    cp.wait()


def _nosort_noop_aliased(x2: jnp.ndarray) -> jnp.ndarray:
    rows, cols = x2.shape
    itemsize = np.dtype(x2.dtype).itemsize
    return pl.pallas_call(
        _noop_aliased_kernel,
        out_shape=jax.ShapeDtypeStruct((rows, cols), x2.dtype),
        in_specs=[pl.BlockSpec(memory_space=pl.ANY)],
        out_specs=pl.BlockSpec(memory_space=pl.ANY),
        scratch_shapes=[pltpu.SemaphoreType.DMA(())],
        # Alias is only useful (and only set) on this path: with a donated
        # input it makes the call ~free; with a non-donated input XLA inserts
        # one defensive copy (same traffic as the copy path, never 3x).
        input_output_aliases={0: 0},
        compiler_params=pltpu.CompilerParams(has_side_effects=True),
        cost_estimate=pl.CostEstimate(
            flops=0, transcendentals=0, bytes_accessed=2 * cols * itemsize
        ),
    )(x2)


def nosort_forward(
    hidden_states: jnp.ndarray,
    *,
    use_kernel: bool = True,
    assume_donated: bool = False,
    chunk_bytes: int = _CHUNK_TARGET_BYTES,
) -> jnp.ndarray:
    """Identity forward pass matching NoSort.forward semantics exactly.

    use_kernel=False     : pure identity, no HBM traffic (optimal path).
    assume_donated=True  : pallas_call stays in the graph but is a near no-op
                           (aliased output buffer, ~0 bytes moved).  Pair with
                           jax.jit donation of `hidden_states` for full effect.
    default              : chunked HBM->HBM DMA copy (no VMEM staging).
    """
    if not use_kernel:
        return hidden_states

    shape = hidden_states.shape
    rows, cols = _choose_slab(shape)
    x2 = hidden_states.reshape(rows, cols)  # row-major flatten: free bitcast

    if assume_donated:
        out2 = _nosort_noop_aliased(x2)
    else:
        out2 = _nosort_hbm_copy(x2, chunk_bytes)

    return out2.reshape(shape)


if __name__ == "__main__":
    key = jax.random.PRNGKey(0)

    # Shapes consistent with (batch_size, sequence_length, hidden_size).
    batch, seq, hidden = 2, 8, 32
    x = jax.random.normal(key, (batch, seq, hidden), dtype=jnp.float32)

    # 1) Default kernel path: chunked HBM->HBM DMA copy.
    out = jax.block_until_ready(nosort_forward(x))
    assert out.shape == x.shape
    assert out.dtype == x.dtype
    assert bool(jnp.array_equal(out, x))

    # 2) Exercise the multi-chunk steady state (tiny chunk target -> 4 chunks,
    #    2 in flight) on a still-small input.
    x_big = jax.random.normal(key, (2, 8, 256), dtype=jnp.float32)
    out_big = jax.block_until_ready(nosort_forward(x_big, chunk_bytes=4096))
    assert bool(jnp.array_equal(out_big, x_big))

    # 3) Donated / aliased near-no-op path (correct with or without donation).
    out_alias = jax.block_until_ready(nosort_forward(x, assume_donated=True))
    assert out_alias.shape == x.shape and out_alias.dtype == x.dtype
    assert bool(jnp.array_equal(out_alias, x))

    # 4) Pure identity fast path (no kernel at all).
    out_fast = jax.block_until_ready(nosort_forward(x, use_kernel=False))
    assert bool(jnp.array_equal(out_fast, x))

    print("KERNEL_OK")
</pallas_src>

<mosaic_0001>
module attributes {stable_mosaic.version = 11 : i64} {
  func.func @kernel(%arg0: memref<1x512xf32, #tpu.memory_space<any>>, %arg1: memref<1x512xf32, #tpu.memory_space<any>>, %arg2: memref<3x!tpu.dma_semaphore, #tpu.memory_space<semaphore_mem>>) attributes {dimension_semantics = [], scalar_prefetch = 0 : i64, scratch_operands = 1 : i64, tpu.core_type = #tpu.core_type<tc>} {
    %c0_i32 = arith.constant 0 : i32
    %c0_i32_0 = arith.constant 0 : i32
    %c0_i32_1 = arith.constant 0 : i32
    %0 = tpu.memref_slice %arg0[%c0_i32_0, %c0_i32_1] : memref<1x512xf32, #tpu.memory_space<any>> -> memref<1x512xf32, #tpu.memory_space<any>>
    %c0_i32_2 = arith.constant 0 : i32
    %c0_i32_3 = arith.constant 0 : i32
    %1 = tpu.memref_slice %arg1[%c0_i32_2, %c0_i32_3] : memref<1x512xf32, #tpu.memory_space<any>> -> memref<1x512xf32, #tpu.memory_space<any>>
    %2 = tpu.memref_slice %arg2[%c0_i32] : memref<3x!tpu.dma_semaphore, #tpu.memory_space<semaphore_mem>> -> memref<1x!tpu.dma_semaphore, #tpu.memory_space<semaphore_mem>>
    %3 = tpu.memref_squeeze %2 : memref<1x!tpu.dma_semaphore, #tpu.memory_space<semaphore_mem>> -> memref<!tpu.dma_semaphore, #tpu.memory_space<semaphore_mem>>
    tpu.enqueue_dma source(%0 : memref<1x512xf32, #tpu.memory_space<any>>) target(%1 : memref<1x512xf32, #tpu.memory_space<any>>) target_semaphore(%3 : memref<!tpu.dma_semaphore, #tpu.memory_space<semaphore_mem>>)
    %c0_i32_4 = arith.constant 0 : i32
    %c0_i32_5 = arith.constant 0 : i32
    %c0_i32_6 = arith.constant 0 : i32
    %4 = tpu.memref_slice %arg0[%c0_i32_5, %c0_i32_6] : memref<1x512xf32, #tpu.memory_space<any>> -> memref<1x512xf32, #tpu.memory_space<any>>
    %c0_i32_7 = arith.constant 0 : i32
    %c0_i32_8 = arith.constant 0 : i32
    %5 = tpu.memref_slice %arg1[%c0_i32_7, %c0_i32_8] : memref<1x512xf32, #tpu.memory_space<any>> -> memref<1x512xf32, #tpu.memory_space<any>>
    %6 = tpu.memref_slice %arg2[%c0_i32_4] : memref<3x!tpu.dma_semaphore, #tpu.memory_space<semaphore_mem>> -> memref<1x!tpu.dma_semaphore, #tpu.memory_space<semaphore_mem>>
    %7 = tpu.memref_squeeze %6 : memref<1x!tpu.dma_semaphore, #tpu.memory_space<semaphore_mem>> -> memref<!tpu.dma_semaphore, #tpu.memory_space<semaphore_mem>>
    tpu.wait_dma2 semaphore(%7 : memref<!tpu.dma_semaphore, #tpu.memory_space<semaphore_mem>>) src(%4 : memref<1x512xf32, #tpu.memory_space<any>>) dst(%5 : memref<1x512xf32, #tpu.memory_space<any>>)
    return
  }
}

</mosaic_0001>

<llo_original>
// kernel: tpu_custom_call.1
$region0: #{tpu_custom_call.1}
  #allocation0 [shape = 'u32[]', space=smem, size = 0x4, offset = 0x4, fixed_abs, tag = 'smem constant byte address 0x4 - core index']
  #allocation1 [shape = 'u32[72,128]{1,0:T(1,128)}', space=vmem, size = 0x9000, scoped, tag = 'internal scratch']
  #allocation2 [shape = 's32[3]{0}', space=sflag, size = 0xc, scoped, tag = 'scratch operand']
  #allocation3 [shape = 's32[]', space=sflag, size = 0x4, offset = 0, fixed_abs, tag = 'sflag constant byte address 0x0 - dummy sync flag']
  #allocation4 [shape = 'u32[0]{0}', space=smem, size = 0, offset = 0, fixed_abs, tag = 'smem constant byte address 0x0 - null']
  %s0 = inlined_call_operand.hbm [shape: f32[1,512], index: 0, kind: input, shape index: {}]
  %s1 = inlined_call_operand.hbm [shape: f32[1,512], index: 1, kind: output, shape index: {}]
  %s2 = sld [smem:[#allocation0]]
  $region2: #{tpu_custom_call.1} parent=0
    _
  %s4 = ssub.s32 1, %s2
  %s5 = scalar_select 0, %s4, %s2
  %s7 = sshll.u32 1, 14
  %s8 = sxor.u32 4294967295, %s7
  %s10 = sshll.u32 %s0, 4
  %s11 = int_to_ptr.hbm [resolvable:$true] %s10
  %s12 = sshll.u32 %s1, 4
  %s13 = int_to_ptr.hbm [resolvable:$true] %s12
  %16 = dma.general %s11, 64, %s13, [#allocation2], [#allocation3], [#allocation4], 0, 0
  %s17 = smul.u32 1, 4
  %s18 = sshll.u32 %s17, 4
  %19 = dma.done [#allocation2], %s18
  %20 = vsyncmov [#allocation2]
  %s21 = vpop.sfrf %20
  %p22 = scmp.eq.s32.totalorder %s21, 0
  %p23 = pneg %p22
  %25 = shalt.err (%p23)
  %s26 = scalar_lea.sflag [#allocation2], 1
  %27 = vsyncmov %s26
  %s28 = vpop.sfrf %27
  %p29 = scmp.eq.s32.totalorder %s28, 0
  %p30 = pneg %p29
  %32 = shalt.err (%p30)
  %s33 = scalar_lea.sflag [#allocation2], 2
  %34 = vsyncmov %s33
  %s35 = vpop.sfrf %34
  %p36 = scmp.eq.s32.totalorder %s35, 0
  %p37 = pneg %p36
  %39 = shalt.err (%p37)

</llo_original>
